<compile_context>
chip_gen: v5e
topology: v5e:2x2
jax: 0.10.0
libtpu: 0.0.40
codegen_flags: <defaults>
</compile_context>

<pallas_src>
from typing import Dict, Sequence, Tuple, Union

import numpy as np

import jax
import jax.numpy as jnp
from jax.experimental import pallas as pl
from jax.experimental.pallas import tpu as pltpu


# ----------------------------------------------------------------------------
# swyft.utils.tupleize_marginals equivalent (pure Python, deterministic)
# ----------------------------------------------------------------------------
MarginalIndex = Union[int, Sequence[int], Sequence[Sequence[int]]]


def tupleize_marginals(marginal_indices: MarginalIndex) -> Tuple[Tuple[int, ...], ...]:
    # depth 0:  2             -> ((2,),)
    # depth 1:  [2, 3]        -> ((2,), (3,))
    # depth 2:  [[0,1],[1,2]] -> ((0,1), (1,2))
    if isinstance(marginal_indices, (int, np.integer)):
        return ((int(marginal_indices),),)
    out = []
    for mi in marginal_indices:
        if isinstance(mi, (int, np.integer)):
            out.append((int(mi),))
        else:
            out.append(tuple(int(i) for i in mi))
    lengths = {len(t) for t in out}
    assert len(lengths) == 1, f"Each tuple in {out} must have the same length."
    return tuple(out)


def _cdiv(a: int, b: int) -> int:
    return -(-a // b)


def _round_up(x: int, m: int) -> int:
    return _cdiv(x, m) * m


# ----------------------------------------------------------------------------
# Pallas kernel: pure DMA + MXU (one-hot selection matmul)
# ----------------------------------------------------------------------------
def _gather_kernel(p_ref, s_ref, o_ref):
    # p_ref : (TB, span)    parameters tile (batch rows x streamed column span)
    # s_ref : (span, Kpad)  precomputed one-hot selection matrix (trace-time constant)
    # o_ref : (TB, Kpad)    gathered columns, lane-dense
    o_ref[...] = jnp.dot(
        p_ref[...], s_ref[...], preferred_element_type=jnp.float32
    ).astype(o_ref.dtype)


class ParameterTransform:
    """JAX/Pallas equivalent of the PyTorch ParameterTransform module."""

    def __init__(self, marginal_indices: MarginalIndex):
        tup = tupleize_marginals(marginal_indices)
        self._idx_np = np.asarray(tup, dtype=np.int64)  # (M, L), static
        # registered-buffer equivalent (exposed like the torch module)
        self.marginal_indices = jnp.asarray(self._idx_np, dtype=jnp.int32)
        self._onehot_cache: Dict[tuple, jnp.ndarray] = {}

    # ------------------------------------------------------------------ helpers
    def _normalized_indices(self, D: int) -> np.ndarray:
        idx = self._idx_np.reshape(-1)
        idx = np.where(idx < 0, idx + D, idx)  # PyTorch negative-index semantics
        assert np.all((idx >= 0) & (idx < D)), (
            f"marginal indices {self._idx_np.tolist()} out of range for D={D}"
        )
        return idx.astype(np.int64)

    @staticmethod
    def _index_span(idx: np.ndarray, D: int) -> Tuple[int, int]:
        lo = (int(idx.min()) // 128) * 128                 # lane-aligned start
        hi = min(D, _round_up(int(idx.max()) + 1, 128))    # lane-aligned end (capped at D)
        return lo, hi

    def _onehot(self, idx: np.ndarray, lo: int, span: int, Kpad: int, dtype) -> jnp.ndarray:
        key = (int(lo), int(span), int(Kpad), jnp.dtype(dtype).name)
        cached = self._onehot_cache.get(key)
        if cached is None:
            K = idx.shape[0]
            oh = np.zeros((span, Kpad), dtype=np.float32)
            oh[idx - lo, np.arange(K)] = 1.0               # 0/1 exact in any float dtype
            cached = jnp.asarray(oh, dtype=dtype)          # single-dtype MXU matmul
            self._onehot_cache[key] = cached
        return cached

    @staticmethod
    def _vmem_capacity_bytes() -> int:
        try:
            return int(pltpu.get_tpu_info().vmem_capacity_bytes)
        except Exception:
            return 64 << 20  # most conservative (v7x per-TensorCore VMEM)

    def _choose_batch_tile(self, B: int, span: int, Kpad: int, itemsize: int):
        """VMEM-aware batch tile. Returns (TB or None, vmem_limit_bytes)."""
        vmem_cap = self._vmem_capacity_bytes()
        vmem_limit = (vmem_cap * 3) // 4        # raise scoped default, keep headroom
        buf_budget = vmem_cap // 2              # pipeline buffers stay within half of physical
        # Resident bytes that do not scale with TB (budget conservatively for a
        # double-buffered one-hot even though we request single-buffering below).
        fixed = 2 * span * Kpad * itemsize
        # Per batch-row bytes: double-buffered input tile row + double-buffered output row.
        per_row = 2 * span * itemsize + 2 * Kpad * itemsize
        rows = (buf_budget - fixed) // per_row
        if rows < min(8, B):
            return None, vmem_limit             # cannot fit even a minimal tile
        tb = min(int(rows), 1024, B)            # 512-1024 rows ~ HBM-roofline sweet spot
        if B >= 1024:
            # Keep >= 4 grid steps so v7x megacore can shard the "parallel" axis across
            # both TensorCores and still double-buffer within each core.
            tb = min(tb, _round_up(_cdiv(B, 4), 8))
        if tb < B:
            tb = max((tb // 8) * 8, 8)          # sublane-aligned tile when not the full batch
        return tb, vmem_limit

    def _xla_gather(self, parameters: jnp.ndarray, idx: np.ndarray) -> jnp.ndarray:
        B = parameters.shape[0]
        M, L = self._idx_np.shape
        flat = jnp.asarray(idx, dtype=jnp.int32)
        return jnp.take(parameters, flat, axis=1).reshape(B, M, L)

    # ------------------------------------------------------------------ forward
    def __call__(self, parameters: jnp.ndarray) -> jnp.ndarray:
        assert parameters.ndim == 2, "expected parameters of shape (batch, n_parameters)"
        B, D = parameters.shape
        M, L = self._idx_np.shape
        K = M * L
        idx = self._normalized_indices(D)

        if not jnp.issubdtype(parameters.dtype, jnp.floating):
            # TODO(synk): integer parameters need a non-MXU gather path (v7x MXU has no int
            # mode); use a plain XLA gather to preserve the module's semantics.
            return self._xla_gather(parameters, idx)

        Kpad = _round_up(K, 128)  # lane-dense output
        itemsize = jnp.dtype(parameters.dtype).itemsize

        # Static index-span slice: stream only the columns that can be selected when the
        # slice copy (~2*span of HBM traffic) is cheaper than reading the unused columns.
        lo, hi = self._index_span(idx, D)
        span = hi - lo
        if 3 * span >= D:
            lo, hi, span = 0, D, D
        params_used = parameters if span == D else parameters[:, lo:hi]

        tb, vmem_limit = self._choose_batch_tile(B, span, Kpad, itemsize)
        if tb is None:
            # TODO(synk): tile the contraction axis (span) with an f32 accumulator for
            # parameter vectors too wide for a VMEM-resident one-hot; XLA gather meanwhile.
            return self._xla_gather(parameters, idx)

        onehot = self._onehot(idx, lo, span, Kpad, parameters.dtype)
        grid = (_cdiv(B, tb),)  # no batch padding: Pallas masks the partial last block
        compiler_params = pltpu.CompilerParams(
            dimension_semantics=("parallel",),
            vmem_limit_bytes=int(vmem_limit),
        )

        def build(single_buffer_onehot: bool):
            if single_buffer_onehot:
                # Constant index_map -> DMA'd once; request a single VMEM buffer for it.
                oh_spec = pl.BlockSpec((span, Kpad), lambda i: (0, 0),
                                       pipeline_mode=pl.Buffered(1))
            else:
                oh_spec = pl.BlockSpec((span, Kpad), lambda i: (0, 0))
            return pl.pallas_call(
                _gather_kernel,
                out_shape=jax.ShapeDtypeStruct((B, Kpad), parameters.dtype),
                grid=grid,
                in_specs=[
                    pl.BlockSpec((tb, span), lambda i: (i, 0)),   # parameters tile
                    oh_spec,                                      # one-hot (resident)
                ],
                out_specs=pl.BlockSpec((tb, Kpad), lambda i: (i, 0)),
                compiler_params=compiler_params,
            )

        try:
            out_flat = build(single_buffer_onehot=True)(params_used, onehot)
        except Exception:
            # Fallback for jax versions without per-operand pipeline_mode support:
            # default double-buffered one-hot (already accounted for in the VMEM budget).
            out_flat = build(single_buffer_onehot=False)(params_used, onehot)

        # Slice the lane padding off, then reshape to (B, M, L).
        return out_flat[:, :K].reshape(B, M, L)


# ----------------------------------------------------------------------------
# Demo / correctness check
# ----------------------------------------------------------------------------
if __name__ == "__main__":
    key = jax.random.PRNGKey(0)
    k1, k2 = jax.random.split(key)

    # Case 1: tiny dense case (batch=4, n_parameters=8), depth-2 marginals.
    B1, D1 = 4, 8
    mi1 = [[0, 1], [1, 2], [2, 3]]
    p1 = jax.random.normal(k1, (B1, D1), dtype=jnp.float32)
    t1 = ParameterTransform(mi1)
    o1 = jax.block_until_ready(t1(p1))
    tup1 = tupleize_marginals(mi1)
    r1 = jnp.stack([p1[..., jnp.asarray(m)] for m in tup1], axis=1)
    assert o1.shape == (B1, len(tup1), len(tup1[0])), o1.shape
    assert jnp.allclose(o1, r1, atol=1e-6), "case 1: mismatch vs reference gather"

    # Case 2: narrow index span inside a wider parameter vector and a batch that is not a
    # multiple of 8 -> exercises the static span-slice path and the no-padding batch grid.
    B2, D2 = 10, 1024
    mi2 = [[200, 201], [202, 203]]
    p2 = jax.random.normal(k2, (B2, D2), dtype=jnp.float32)
    t2 = ParameterTransform(mi2)
    o2 = jax.block_until_ready(t2(p2))
    tup2 = tupleize_marginals(mi2)
    r2 = jnp.stack([p2[..., jnp.asarray(m)] for m in tup2], axis=1)
    assert o2.shape == (B2, len(tup2), len(tup2[0])), o2.shape
    assert jnp.allclose(o2, r2, atol=1e-6), "case 2: mismatch vs reference gather"

    print("KERNEL_OK")
</pallas_src>

<mosaic_0001>
module attributes {stable_mosaic.version = 11 : i64} {
  func.func @_gather_kernel(%arg0: i32, %arg1: memref<4x8xf32, #tpu.memory_space<vmem>>, %arg2: memref<8x128xf32, #tpu.memory_space<vmem>>, %arg3: memref<4x128xf32, #tpu.memory_space<vmem>>) attributes {dimension_semantics = [#tpu.dimension_semantics<parallel>], iteration_bounds = array<i64: 1>, scalar_prefetch = 0 : i64, scratch_operands = 0 : i64, tpu.core_type = #tpu.core_type<tc>, window_params = [{transform_indices = @transform_0, window_bounds = array<i64: 4, 8>}, {pipeline_mode = #tpu.pipeline_mode<synchronous>, transform_indices = @transform_1, window_bounds = array<i64: 8, 128>}, {transform_indices = @transform_2, window_bounds = array<i64: 4, 128>}]} {
    %c0 = arith.constant 0 : index
    %c0_0 = arith.constant 0 : index
    %0 = vector.load %arg1[%c0, %c0_0] : memref<4x8xf32, #tpu.memory_space<vmem>>, vector<4x8xf32>
    %c0_1 = arith.constant 0 : index
    %c0_2 = arith.constant 0 : index
    %1 = vector.load %arg2[%c0_1, %c0_2] : memref<8x128xf32, #tpu.memory_space<vmem>>, vector<8x128xf32>
    %cst = arith.constant dense<0.000000e+00> : vector<4x128xf32>
    %2 = tpu.matmul %0, %1, %cst {dimension_numbers = #tpu.dot_dimension_numbers<[1], [0], [0], [1], [0, 0, 1, 1], [], []>} : vector<4x8xf32>, vector<8x128xf32>, vector<4x128xf32> -> vector<4x128xf32>
    %c0_3 = arith.constant 0 : index
    %c0_4 = arith.constant 0 : index
    %3 = vector.load %arg3[%c0_3, %c0_4] : memref<4x128xf32, #tpu.memory_space<vmem>>, vector<4x128xf32>
    tpu.vector_store %arg3[%c0_3, %c0_4], %2 {strides = array<i32>} : memref<4x128xf32, #tpu.memory_space<vmem>>, vector<4x128xf32>,
    return
  }
  func.func @transform_0(%arg0: i32) -> (i32, i32) {
    %c0_i32 = arith.constant 0 : i32
    %c0_i32_0 = arith.constant 0 : i32
    return %arg0, %c0_i32 : i32, i32
  }
  func.func @transform_1(%arg0: i32) -> (i32, i32) {
    %c0_i32 = arith.constant 0 : i32
    %c0_i32_0 = arith.constant 0 : i32
    %c0_i32_1 = arith.constant 0 : i32
    return %c0_i32, %c0_i32_0 : i32, i32
  }
  func.func @transform_2(%arg0: i32) -> (i32, i32) {
    %c0_i32 = arith.constant 0 : i32
    %c0_i32_0 = arith.constant 0 : i32
    return %arg0, %c0_i32 : i32, i32
  }
}

module attributes {stable_mosaic.version = 11 : i64} {
  func.func @_gather_kernel(%arg0: i32, %arg1: memref<4x8xf32, #tpu.memory_space<vmem>>, %arg2: memref<8x128xf32, #tpu.memory_space<vmem>>, %arg3: memref<4x128xf32, #tpu.memory_space<vmem>>) attributes {dimension_semantics = [#tpu.dimension_semantics<parallel>], iteration_bounds = array<i64: 1>, scalar_prefetch = 0 : i64, scratch_operands = 0 : i64, tpu.core_type = #tpu.core_type<tc>, window_params = [{transform_indices = @transform_0, window_bounds = array<i64: 4, 8>}, {pipeline_mode = #tpu.pipeline_mode<synchronous>, transform_indices = @transform_1, window_bounds = array<i64: 8, 128>}, {transform_indices = @transform_2, window_bounds = array<i64: 4, 128>}]} {
    %c0 = arith.constant 0 : index
    %c0_0 = arith.constant 0 : index
    %0 = vector.load %arg1[%c0, %c0_0] : memref<4x8xf32, #tpu.memory_space<vmem>>, vector<4x8xf32>
    %c0_1 = arith.constant 0 : index
    %c0_2 = arith.constant 0 : index
    %1 = vector.load %arg2[%c0_1, %c0_2] : memref<8x128xf32, #tpu.memory_space<vmem>>, vector<8x128xf32>
    %cst = arith.constant dense<0.000000e+00> : vector<4x128xf32>
    %2 = tpu.matmul %0, %1, %cst {dimension_numbers = #tpu.dot_dimension_numbers<[1], [0], [0], [1], [0, 0, 1, 1], [], []>} : vector<4x8xf32>, vector<8x128xf32>, vector<4x128xf32> -> vector<4x128xf32>
    %c0_3 = arith.constant 0 : index
    %c0_4 = arith.constant 0 : index
    %3 = vector.load %arg3[%c0_3, %c0_4] : memref<4x128xf32, #tpu.memory_space<vmem>>, vector<4x128xf32>
    tpu.vector_store %arg3[%c0_3, %c0_4], %2 {strides = array<i32>} : memref<4x128xf32, #tpu.memory_space<vmem>>, vector<4x128xf32>,
    return
  }
  func.func @transform_0(%arg0: i32) -> (i32, i32) {
    %c0_i32 = arith.constant 0 : i32
    %c0_i32_0 = arith.constant 0 : i32
    return %arg0, %c0_i32 : i32, i32
  }
  func.func @transform_1(%arg0: i32) -> (i32, i32) {
    %c0_i32 = arith.constant 0 : i32
    %c0_i32_0 = arith.constant 0 : i32
    %c0_i32_1 = arith.constant 0 : i32
    return %c0_i32, %c0_i32_0 : i32, i32
  }
  func.func @transform_2(%arg0: i32) -> (i32, i32) {
    %c0_i32 = arith.constant 0 : i32
    %c0_i32_0 = arith.constant 0 : i32
    return %arg0, %c0_i32 : i32, i32
  }
}

</mosaic_0001>

<llo_original>
// kernel: tpu_custom_call.1
$region0: #{tpu_custom_call.1}
  #allocation0 [shape = 'u32[]', space=smem, size = 0x4, offset = 0x4, fixed_abs, tag = 'smem constant byte address 0x4 - core index']
  #allocation1 [shape = 'u32[72,128]{1,0:T(1,128)}', space=vmem, size = 0x9000, scoped, tag = 'internal scratch']
  %s0 = inlined_call_operand.hbm [shape: f32[4,8], index: 0, kind: input, shape index: {}]
  %s1 = inlined_call_operand.hbm [shape: f32[8,128], index: 1, kind: input, shape index: {}]
  %s2 = inlined_call_operand.hbm [shape: f32[4,128], index: 2, kind: output, shape index: {}]
  %s3 = sld [smem:[#allocation0]]
  $region26: #{tpu_custom_call.1} parent=0
    _
  %s5 = ssub.s32 1, %s3
  %s6 = scalar_select 0, %s5, %s3
  $region1: #{tpu_custom_call.1} parent=0
    #allocation2 [shape = 'u8[2048]{0}', space=vmem, size = 0x800, scoped, tag = 'input window, operand 0, single buffered']
    #allocation3 [shape = 's32[1]{0}', space=sflag, size = 0x4, scoped, tag = 'scoped memory for tpu_custom_call.1']
    #allocation4 [shape = 's32[1]{0}', space=sflag, size = 0x4, scoped, tag = 'scoped memory for tpu_custom_call.1']
    #allocation5 [shape = 'u8[4096]{0}', space=vmem, size = 0x1000, scoped, tag = 'input window, operand 1, single buffered']
    #allocation6 [shape = 's32[1]{0}', space=sflag, size = 0x4, scoped, tag = 'scoped memory for tpu_custom_call.1']
    #allocation7 [shape = 'u8[2048]{0}', space=vmem, size = 0x800, scoped, tag = 'output window, operand 0, single buffered']
    %7 = vsyncpa [#allocation3], 0
    %8 = vsyncpa [#allocation6], 0
    %9 = vsyncpa [#allocation4], 0
    // Predicated region
    $region2: #{tpu_custom_call.1} parent=1 // pred_check
      _
    $region3: #{tpu_custom_call.1} parent=1 // pred_check_branch
      %11 = sbr.rel (0) target = $region5
    $region4: #{tpu_custom_call.1} parent=1 // pred_region
      %13 = vsyncadd [#allocation3], 0
      %s15 = sshll.u32 %s0, 4
      %s16 = int_to_ptr.hbm [resolvable:$true] %s15
      %s17 = sshll.u32 [#allocation2], 4
      %s18 = int_to_ptr.vmem [resolvable:$true] %s17
      %20 = dma.hbm_to_vmem [thread:$0]  %s16, 64, %s18, [#allocation3]
    $region5: #{tpu_custom_call.1} parent=1 // pred_fallthru
      _
    // Predicated region
    $region6: #{tpu_custom_call.1} parent=1 // pred_check
      _
    $region7: #{tpu_custom_call.1} parent=1 // pred_check_branch
      %22 = sbr.rel (0) target = $region9
    $region8: #{tpu_custom_call.1} parent=1 // pred_region
      %24 = vsyncadd [#allocation6], 0
      %s26 = sshll.u32 %s1, 4
      %s27 = int_to_ptr.hbm [resolvable:$true] %s26
      %s28 = sshll.u32 [#allocation5], 4
      %s29 = int_to_ptr.vmem [resolvable:$true] %s28
      %31 = dma.hbm_to_vmem [thread:$0]  %s27, 128, %s29, [#allocation6]
    $region9: #{tpu_custom_call.1} parent=1 // pred_fallthru
      _
    // Predicated region
    $region10: #{tpu_custom_call.1} parent=1 // pred_check
      _
    $region11: #{tpu_custom_call.1} parent=1 // pred_check_branch
      %33 = sbr.rel (0) target = $region13
    $region12: #{tpu_custom_call.1} parent=1 // pred_region
      %35 = dma.done [#allocation3], 64
    $region13: #{tpu_custom_call.1} parent=1 // pred_fallthru
      _
    // Predicated region
    $region14: #{tpu_custom_call.1} parent=1 // pred_check
      _
    $region15: #{tpu_custom_call.1} parent=1 // pred_check_branch
      %37 = sbr.rel (0) target = $region17
    $region16: #{tpu_custom_call.1} parent=1 // pred_region
      %39 = dma.done [#allocation6], 128
    $region17: #{tpu_custom_call.1} parent=1 // pred_fallthru
      _
    %v40 = vld [vmem:[#allocation2] sm:$0xf]
    %v41 = vld [vmem:[#allocation5] sm:$0xff]
    %vm42 = vcmask 64512
    %v44 = vsel %vm42, %v40, 0
    %46 = vmatpush.msra.mxu0 0.0
    %47 = vmatpush.msra.mxu0 0.0
    %48 = vmatpush.msra.mxu0 0.0
    %49 = vmatpush.msra.mxu0 0.0
    %50 = vmatpush.msra.mxu0 0.0
    %51 = vmatpush.msra.mxu0 0.0
    %52 = vmatpush.msra.mxu0 0.0
    %53 = vmatpush.msra.mxu0 0.0
    %54 = vmatpush.msra.mxu0 0.0
    %55 = vmatpush.msra.mxu0 0.0
    %56 = vmatpush.msra.mxu0 0.0
    %57 = vmatpush.msra.mxu0 0.0
    %58 = vmatpush.msra.mxu0 0.0
    %59 = vmatpush.msra.mxu0 0.0
    %60 = vmatpush.msra.mxu0 0.0
    %61 = vmatpush.msra.mxu0 %v41
    %62 = vmatmul.f32.gmra.mxu0 %v44
    %v63 = vpop.f32.mrf.mxu0
    %v64 = vadd.f32 0.0, %v63
    %65 = vdwg.mxu0
    %66 = vst [vmem:[#allocation7] sm:$0xf] %v64
    // Predicated region
    $region18: #{tpu_custom_call.1} parent=1 // pred_check
      _
    $region19: #{tpu_custom_call.1} parent=1 // pred_check_branch
      %68 = sbr.rel (0) target = $region21
    $region20: #{tpu_custom_call.1} parent=1 // pred_region
      %70 = vsyncadd [#allocation4], 0
      %s72 = sshll.u32 [#allocation7], 4
      %s73 = int_to_ptr.vmem [resolvable:$true] %s72
      %s74 = sshll.u32 %s2, 4
      %s75 = int_to_ptr.hbm [resolvable:$true] %s74
      %77 = dma.vmem_to_hbm [thread:$0]  %s73, 64, %s75, [#allocation4]
    $region21: #{tpu_custom_call.1} parent=1 // pred_fallthru
      _
    // Predicated region
    $region22: #{tpu_custom_call.1} parent=1 // pred_check
      _
    $region23: #{tpu_custom_call.1} parent=1 // pred_check_branch
      %79 = sbr.rel (0) target = $region25
    $region24: #{tpu_custom_call.1} parent=1 // pred_region
      %81 = dma.done [#allocation4], 64
    $region25: #{tpu_custom_call.1} parent=1 // pred_fallthru
      _
    %82 = vsyncpa [#allocation3], 1
    %83 = vsyncpa [#allocation6], 1
    %84 = vsyncpa [#allocation4], 1

// kernel: tpu_custom_call.1
$region0: #{tpu_custom_call.1}
  #allocation0 [shape = 'u32[]', space=smem, size = 0x4, offset = 0x4, fixed_abs, tag = 'smem constant byte address 0x4 - core index']
  #allocation1 [shape = 'u32[72,128]{1,0:T(1,128)}', space=vmem, size = 0x9000, scoped, tag = 'internal scratch']
  %s0 = inlined_call_operand.hbm [shape: f32[4,8], index: 0, kind: input, shape index: {}]
  %s1 = inlined_call_operand.hbm [shape: f32[8,128], index: 1, kind: input, shape index: {}]
  %s2 = inlined_call_operand.hbm [shape: f32[4,128], index: 2, kind: output, shape index: {}]
  %s3 = sld [smem:[#allocation0]]
  $region26: #{tpu_custom_call.1} parent=0
    _
  %s5 = ssub.s32 1, %s3
  %s6 = scalar_select 0, %s5, %s3
  $region1: #{tpu_custom_call.1} parent=0
    #allocation2 [shape = 'u8[2048]{0}', space=vmem, size = 0x800, scoped, tag = 'input window, operand 0, single buffered']
    #allocation3 [shape = 's32[1]{0}', space=sflag, size = 0x4, scoped, tag = 'scoped memory for tpu_custom_call.1']
    #allocation4 [shape = 's32[1]{0}', space=sflag, size = 0x4, scoped, tag = 'scoped memory for tpu_custom_call.1']
    #allocation5 [shape = 'u8[4096]{0}', space=vmem, size = 0x1000, scoped, tag = 'input window, operand 1, single buffered']
    #allocation6 [shape = 's32[1]{0}', space=sflag, size = 0x4, scoped, tag = 'scoped memory for tpu_custom_call.1']
    #allocation7 [shape = 'u8[2048]{0}', space=vmem, size = 0x800, scoped, tag = 'output window, operand 0, single buffered']
    %7 = vsyncpa [#allocation3], 0
    %8 = vsyncpa [#allocation6], 0
    %9 = vsyncpa [#allocation4], 0
    // Predicated region
    $region2: #{tpu_custom_call.1} parent=1 // pred_check
      _
    $region3: #{tpu_custom_call.1} parent=1 // pred_check_branch
      %11 = sbr.rel (0) target = $region5
    $region4: #{tpu_custom_call.1} parent=1 // pred_region
      %13 = vsyncadd [#allocation3], 0
      %s15 = sshll.u32 %s0, 4
      %s16 = int_to_ptr.hbm [resolvable:$true] %s15
      %s17 = sshll.u32 [#allocation2], 4
      %s18 = int_to_ptr.vmem [resolvable:$true] %s17
      %20 = dma.hbm_to_vmem [thread:$0]  %s16, 64, %s18, [#allocation3]
    $region5: #{tpu_custom_call.1} parent=1 // pred_fallthru
      _
    // Predicated region
    $region6: #{tpu_custom_call.1} parent=1 // pred_check
      _
    $region7: #{tpu_custom_call.1} parent=1 // pred_check_branch
      %22 = sbr.rel (0) target = $region9
    $region8: #{tpu_custom_call.1} parent=1 // pred_region
      %24 = vsyncadd [#allocation6], 0
      %s26 = sshll.u32 %s1, 4
      %s27 = int_to_ptr.hbm [resolvable:$true] %s26
      %s28 = sshll.u32 [#allocation5], 4
      %s29 = int_to_ptr.vmem [resolvable:$true] %s28
      %31 = dma.hbm_to_vmem [thread:$0]  %s27, 128, %s29, [#allocation6]
    $region9: #{tpu_custom_call.1} parent=1 // pred_fallthru
      _
    // Predicated region
    $region10: #{tpu_custom_call.1} parent=1 // pred_check
      _
    $region11: #{tpu_custom_call.1} parent=1 // pred_check_branch
      %33 = sbr.rel (0) target = $region13
    $region12: #{tpu_custom_call.1} parent=1 // pred_region
      %35 = dma.done [#allocation3], 64
    $region13: #{tpu_custom_call.1} parent=1 // pred_fallthru
      _
    // Predicated region
    $region14: #{tpu_custom_call.1} parent=1 // pred_check
      _
    $region15: #{tpu_custom_call.1} parent=1 // pred_check_branch
      %37 = sbr.rel (0) target = $region17
    $region16: #{tpu_custom_call.1} parent=1 // pred_region
      %39 = dma.done [#allocation6], 128
    $region17: #{tpu_custom_call.1} parent=1 // pred_fallthru
      _
    %v40 = vld [vmem:[#allocation2] sm:$0xf]
    %v41 = vld [vmem:[#allocation5] sm:$0xff]
    %vm42 = vcmask 64512
    %v44 = vsel %vm42, %v40, 0
    %46 = vmatpush.msra.mxu0 0.0
    %47 = vmatpush.msra.mxu0 0.0
    %48 = vmatpush.msra.mxu0 0.0
    %49 = vmatpush.msra.mxu0 0.0
    %50 = vmatpush.msra.mxu0 0.0
    %51 = vmatpush.msra.mxu0 0.0
    %52 = vmatpush.msra.mxu0 0.0
    %53 = vmatpush.msra.mxu0 0.0
    %54 = vmatpush.msra.mxu0 0.0
    %55 = vmatpush.msra.mxu0 0.0
    %56 = vmatpush.msra.mxu0 0.0
    %57 = vmatpush.msra.mxu0 0.0
    %58 = vmatpush.msra.mxu0 0.0
    %59 = vmatpush.msra.mxu0 0.0
    %60 = vmatpush.msra.mxu0 0.0
    %61 = vmatpush.msra.mxu0 %v41
    %62 = vmatmul.f32.gmra.mxu0 %v44
    %v63 = vpop.f32.mrf.mxu0
    %v64 = vadd.f32 0.0, %v63
    %65 = vdwg.mxu0
    %66 = vst [vmem:[#allocation7] sm:$0xf] %v64
    // Predicated region
    $region18: #{tpu_custom_call.1} parent=1 // pred_check
      _
    $region19: #{tpu_custom_call.1} parent=1 // pred_check_branch
      %68 = sbr.rel (0) target = $region21
    $region20: #{tpu_custom_call.1} parent=1 // pred_region
      %70 = vsyncadd [#allocation4], 0
      %s72 = sshll.u32 [#allocation7], 4
      %s73 = int_to_ptr.vmem [resolvable:$true] %s72
      %s74 = sshll.u32 %s2, 4
      %s75 = int_to_ptr.hbm [resolvable:$true] %s74
      %77 = dma.vmem_to_hbm [thread:$0]  %s73, 64, %s75, [#allocation4]
    $region21: #{tpu_custom_call.1} parent=1 // pred_fallthru
      _
    // Predicated region
    $region22: #{tpu_custom_call.1} parent=1 // pred_check
      _
    $region23: #{tpu_custom_call.1} parent=1 // pred_check_branch
      %79 = sbr.rel (0) target = $region25
    $region24: #{tpu_custom_call.1} parent=1 // pred_region
      %81 = dma.done [#allocation4], 64
    $region25: #{tpu_custom_call.1} parent=1 // pred_fallthru
      _
    %82 = vsyncpa [#allocation3], 1
    %83 = vsyncpa [#allocation6], 1
    %84 = vsyncpa [#allocation4], 1

</llo_original>
